<compile_context>
chip_gen: v5e
topology: v5e:2x2
jax: 0.10.0
libtpu: 0.0.40
codegen_flags: <defaults>
</compile_context>

<pallas_src>
import functools

import jax
import jax.numpy as jnp
from jax.experimental import pallas as pl
from jax.experimental.pallas import tpu as pltpu

_LANES = 128


def _jaccard_partial_kernel(yp_ref, yt_ref, inter_ref, card_ref, *,
                            apply_sigmoid, rows_valid, block_rows,
                            blocks_per_split, needs_mask):
    i = pl.program_id(0)           # split axis ("parallel": maps to TCs on v7x)
    k = pl.program_id(1)           # reduction axis ("arbitrary")
    g = i * blocks_per_split + k   # global row-block index

    @pl.when(k == 0)
    def _():
        inter_ref[...] = jnp.zeros_like(inter_ref)
        card_ref[...] = jnp.zeros_like(card_ref)

    def _load():
        yp = yp_ref[...].astype(jnp.float32)
        yt = yt_ref[...].astype(jnp.float32)
        if apply_sigmoid:
            yp = jax.nn.sigmoid(yp)
        return yp, yt

    def _accumulate(yp, yt):
        # Per-lane partial sums (sublane reduce only); the cross-lane reduce is
        # deferred to the wrapper finalize.
        inter_ref[...] += jnp.sum(yp * yt, axis=1)
        card_ref[...] += jnp.sum(yp + yt, axis=1)

    if not needs_mask:
        yp, yt = _load()
        _accumulate(yp, yt)
    else:
        is_full = (g + 1) * block_rows <= rows_valid

        @pl.when(is_full)
        def _():
            yp, yt = _load()
            _accumulate(yp, yt)

        @pl.when(jnp.logical_not(is_full))
        def _():
            # Boundary (or overshoot) block: mask rows past the true extent.
            yp, yt = _load()
            row = (jax.lax.broadcasted_iota(jnp.int32, yp.shape, 1)
                   + g * block_rows)
            valid = row < rows_valid
            # jnp.where (not multiply) so garbage/NaN past the bound is dropped.
            _accumulate(jnp.where(valid, yp, 0.0), jnp.where(valid, yt, 0.0))


def jaccard_loss(y_pred, y_true, apply_sigmoid=True, smooth=0.0, eps=1e-7,
                 block_rows=None, n_splits=None):
    """Pallas TPU implementation of JaccardLoss.forward."""
    batch = y_pred.shape[0]
    yp = y_pred.reshape(batch, -1)
    yt = y_true.reshape(batch, -1)
    n = yp.shape[1]

    # Pack the flattened axis as (rows, 128) so vregs are fully dense even when
    # batch < 8. Only if n is not a multiple of 128 do we pad (< 128 lanes per
    # row); the bias that zero-padding adds through sigmoid(0)=0.5 is removed
    # analytically at the end, so no in-kernel masking of lanes is needed.
    n128 = pl.cdiv(n, _LANES) * _LANES
    if n128 != n:
        yp = jnp.pad(yp, ((0, 0), (0, n128 - n)))
        yt = jnp.pad(yt, ((0, 0), (0, n128 - n)))
    rows = n128 // _LANES
    yp = yp.reshape(batch, rows, _LANES)
    yt = yt.reshape(batch, rows, _LANES)

    # Row tile sized for ~4 MiB of input per block (both operands combined),
    # i.e. ~8 MiB double-buffered: fits every generation's scoped VMEM budget.
    if block_rows is None:
        bytes_per_row = batch * _LANES * (yp.dtype.itemsize + yt.dtype.itemsize)
        block_rows = max(16, ((4 * 1024 * 1024) // bytes_per_row) // 16 * 16)
    block_rows = min(block_rows, rows)

    n_blocks = pl.cdiv(rows, block_rows)
    if n_splits is None:
        n_splits = 2 if n_blocks >= 2 else 1   # feed both TensorCores on v7x
    n_splits = max(1, min(n_splits, n_blocks))
    blocks_per_split = pl.cdiv(n_blocks, n_splits)

    overshoot = n_splits * blocks_per_split > n_blocks
    needs_mask = overshoot or (rows % block_rows != 0)

    if overshoot:
        def in_index(i, k):
            return (0, jnp.minimum(i * blocks_per_split + k, n_blocks - 1), 0)
    else:
        def in_index(i, k):
            return (0, i * blocks_per_split + k, 0)

    kernel = functools.partial(
        _jaccard_partial_kernel,
        apply_sigmoid=apply_sigmoid,
        rows_valid=rows,
        block_rows=block_rows,
        blocks_per_split=blocks_per_split,
        needs_mask=needs_mask,
    )

    inter_part, card_part = pl.pallas_call(
        kernel,
        out_shape=(
            jax.ShapeDtypeStruct((n_splits, batch, _LANES), jnp.float32),
            jax.ShapeDtypeStruct((n_splits, batch, _LANES), jnp.float32),
        ),
        grid_spec=pltpu.PrefetchScalarGridSpec(
            num_scalar_prefetch=0,
            grid=(n_splits, blocks_per_split),
            in_specs=[
                pl.BlockSpec((batch, block_rows, _LANES), in_index),
                pl.BlockSpec((batch, block_rows, _LANES), in_index),
            ],
            out_specs=[
                pl.BlockSpec((None, batch, _LANES), lambda i, k: (i, 0, 0)),
                pl.BlockSpec((None, batch, _LANES), lambda i, k: (i, 0, 0)),
            ],
        ),
        compiler_params=pltpu.CompilerParams(
            dimension_semantics=("parallel", "arbitrary"),
            vmem_limit_bytes=32 * 1024 * 1024,
        ),
    )(yp, yt)

    # Finalize on tiny (n_splits, B, 128) partials: combine split halves, do the
    # single cross-lane reduce, undo the lane-padding bias, form the loss.
    inter = jnp.sum(inter_part, axis=(0, 2))
    card = jnp.sum(card_part, axis=(0, 2))
    if apply_sigmoid and n128 != n:
        card = card - 0.5 * (n128 - n)   # sigmoid(0)=0.5 per zero-padded lane
    union = card - inter
    score = (inter + smooth) / jnp.maximum(union + smooth, eps)
    return jnp.mean(1.0 - score)


def _jaccard_ref(y_pred, y_true, apply_sigmoid=True, smooth=0.0, eps=1e-7):
    """Plain-JAX reference mirroring the PyTorch module."""
    b = y_pred.shape[0]
    yp = y_pred.astype(jnp.float32)
    if apply_sigmoid:
        yp = jax.nn.sigmoid(yp)
    yp = yp.reshape(b, 1, -1)
    yt = y_true.astype(jnp.float32).reshape(b, 1, -1)
    inter = jnp.sum(yp * yt, axis=2)
    card = jnp.sum(yp + yt, axis=2)
    union = card - inter
    score = (inter + smooth) / jnp.maximum(union + smooth, eps)
    return jnp.mean(1.0 - score)


if __name__ == "__main__":
    key = jax.random.PRNGKey(0)
    k1, k2, k3, k4, k5, k6 = jax.random.split(key, 6)

    # Test 1: canonical small NCHW shapes, f32, N divisible by 128 (no padding).
    B, C, H, W = 2, 4, 16, 16
    y_pred = jax.random.normal(k1, (B, C, H, W), dtype=jnp.float32)
    y_true = (jax.random.uniform(k2, (B, C, H, W)) > 0.5).astype(jnp.float32)
    loss = jaccard_loss(y_pred, y_true)
    jax.block_until_ready(loss)
    ref = _jaccard_ref(y_pred, y_true)
    assert jnp.allclose(loss, ref, atol=1e-5, rtol=1e-4), (loss, ref)

    # Test 2: flattened length not a multiple of 128 (lane padding + analytic
    # cardinality correction), non-zero smooth.
    B, C, H, W = 2, 3, 20, 24
    y_pred = jax.random.normal(k3, (B, C, H, W), dtype=jnp.float32)
    y_true = (jax.random.uniform(k4, (B, C, H, W)) > 0.5).astype(jnp.float32)
    loss = jaccard_loss(y_pred, y_true, smooth=1.0)
    jax.block_until_ready(loss)
    ref = _jaccard_ref(y_pred, y_true, smooth=1.0)
    assert jnp.allclose(loss, ref, atol=1e-5, rtol=1e-4), (loss, ref)

    # Test 3: bf16 predictions plus a forced small row tile and 2-way split so
    # the boundary-mask / overshoot-clamp / multi-core paths are exercised.
    B, C, H, W = 2, 5, 32, 32
    y_pred = jax.random.normal(k5, (B, C, H, W),
                               dtype=jnp.float32).astype(jnp.bfloat16)
    y_true = (jax.random.uniform(k6, (B, C, H, W)) > 0.5).astype(jnp.float32)
    loss = jaccard_loss(y_pred, y_true, block_rows=16, n_splits=2)
    jax.block_until_ready(loss)
    ref = _jaccard_ref(y_pred.astype(jnp.float32), y_true)
    assert jnp.allclose(loss, ref, atol=1e-4, rtol=1e-4), (loss, ref)

    print("KERNEL_OK")
</pallas_src>

<mosaic_0001>
module attributes {stable_mosaic.version = 11 : i64} {
  func.func @_jaccard_partial_kernel(%arg0: i32, %arg1: i32, %arg2: memref<2x8x128xf32, #tpu.memory_space<vmem>>, %arg3: memref<2x8x128xf32, #tpu.memory_space<vmem>>, %arg4: memref<1x2x128xf32, #tpu.memory_space<vmem>>, %arg5: memref<1x2x128xf32, #tpu.memory_space<vmem>>) attributes {dimension_semantics = [#tpu.dimension_semantics<parallel>, #tpu.dimension_semantics<arbitrary>], iteration_bounds = array<i64: 1, 1>, scalar_prefetch = 0 : i64, scratch_operands = 0 : i64, tpu.core_type = #tpu.core_type<tc>, window_params = [{transform_indices = @transform_0, window_bounds = array<i64: 2, 8, 128>}, {transform_indices = @transform_1, window_bounds = array<i64: 2, 8, 128>}, {transform_indices = @transform_2, window_bounds = array<i64: 1, 2, 128>}, {transform_indices = @transform_3, window_bounds = array<i64: 1, 2, 128>}]} {
    %c0_i32 = arith.constant 0 : i32
    %0 = arith.cmpi eq, %arg1, %c0_i32 : i32
    %1 = arith.extui %0 : i1 to i32
    %c0_i32_0 = arith.constant 0 : i32
    %2 = arith.cmpi ne, %1, %c0_i32_0 : i32
    scf.if %2 {
      %cst_20 = arith.constant 0.000000e+00 : f32
      %26 = vector.broadcast %cst_20 : f32 to vector<2x128xf32>
      %c0_21 = arith.constant 0 : index
      %c0_22 = arith.constant 0 : index
      %c0_23 = arith.constant 0 : index
      %27 = vector.load %arg4[%c0_21, %c0_22, %c0_23] : memref<1x2x128xf32, #tpu.memory_space<vmem>>, vector<1x2x128xf32>
      %28 = vector.shape_cast %27 : vector<1x2x128xf32> to vector<2x128xf32>
      %29 = vector.shape_cast %26 : vector<2x128xf32> to vector<1x2x128xf32>
      tpu.vector_store %arg4[%c0_21, %c0_22, %c0_23], %29 {strides = array<i32>} : memref<1x2x128xf32, #tpu.memory_space<vmem>>, vector<1x2x128xf32>,
      %cst_24 = arith.constant 0.000000e+00 : f32
      %30 = vector.broadcast %cst_24 : f32 to vector<2x128xf32>
      %c0_25 = arith.constant 0 : index
      %c0_26 = arith.constant 0 : index
      %c0_27 = arith.constant 0 : index
      %31 = vector.load %arg5[%c0_25, %c0_26, %c0_27] : memref<1x2x128xf32, #tpu.memory_space<vmem>>, vector<1x2x128xf32>
      %32 = vector.shape_cast %31 : vector<1x2x128xf32> to vector<2x128xf32>
      %33 = vector.shape_cast %30 : vector<2x128xf32> to vector<1x2x128xf32>
      tpu.vector_store %arg5[%c0_25, %c0_26, %c0_27], %33 {strides = array<i32>} : memref<1x2x128xf32, #tpu.memory_space<vmem>>, vector<1x2x128xf32>,
    } else {
    }
    %c0 = arith.constant 0 : index
    %c0_1 = arith.constant 0 : index
    %c0_2 = arith.constant 0 : index
    %3 = vector.load %arg2[%c0, %c0_1, %c0_2] : memref<2x8x128xf32, #tpu.memory_space<vmem>>, vector<2x8x128xf32>
    %c0_3 = arith.constant 0 : index
    %c0_4 = arith.constant 0 : index
    %c0_5 = arith.constant 0 : index
    %4 = vector.load %arg3[%c0_3, %c0_4, %c0_5] : memref<2x8x128xf32, #tpu.memory_space<vmem>>, vector<2x8x128xf32>
    %5 = arith.negf %3 : vector<2x8x128xf32>
    %6 = math.exp %5 : vector<2x8x128xf32>
    %cst = arith.constant 1.000000e+00 : f32
    %7 = vector.broadcast %cst : f32 to vector<2x8x128xf32>
    %8 = arith.addf %7, %6 : vector<2x8x128xf32>
    %9 = arith.divf %7, %8 : vector<2x8x128xf32>
    %c0_6 = arith.constant 0 : index
    %c0_7 = arith.constant 0 : index
    %c0_8 = arith.constant 0 : index
    %10 = vector.load %arg4[%c0_6, %c0_7, %c0_8] : memref<1x2x128xf32, #tpu.memory_space<vmem>>, vector<1x2x128xf32>
    %11 = vector.shape_cast %10 : vector<1x2x128xf32> to vector<2x128xf32>
    %12 = arith.mulf %9, %4 : vector<2x8x128xf32>
    %cst_9 = arith.constant dense<0.000000e+00> : vector<2x128xf32>
    %13 = vector.multi_reduction <add>, %12, %cst_9 [1] : vector<2x8x128xf32> to vector<2x128xf32>
    %14 = arith.addf %11, %13 : vector<2x128xf32>
    %c0_10 = arith.constant 0 : index
    %c0_11 = arith.constant 0 : index
    %c0_12 = arith.constant 0 : index
    %15 = vector.load %arg4[%c0_10, %c0_11, %c0_12] : memref<1x2x128xf32, #tpu.memory_space<vmem>>, vector<1x2x128xf32>
    %16 = vector.shape_cast %15 : vector<1x2x128xf32> to vector<2x128xf32>
    %17 = vector.shape_cast %14 : vector<2x128xf32> to vector<1x2x128xf32>
    tpu.vector_store %arg4[%c0_10, %c0_11, %c0_12], %17 {strides = array<i32>} : memref<1x2x128xf32, #tpu.memory_space<vmem>>, vector<1x2x128xf32>,
    %c0_13 = arith.constant 0 : index
    %c0_14 = arith.constant 0 : index
    %c0_15 = arith.constant 0 : index
    %18 = vector.load %arg5[%c0_13, %c0_14, %c0_15] : memref<1x2x128xf32, #tpu.memory_space<vmem>>, vector<1x2x128xf32>
    %19 = vector.shape_cast %18 : vector<1x2x128xf32> to vector<2x128xf32>
    %20 = arith.addf %9, %4 : vector<2x8x128xf32>
    %cst_16 = arith.constant dense<0.000000e+00> : vector<2x128xf32>
    %21 = vector.multi_reduction <add>, %20, %cst_16 [1] : vector<2x8x128xf32> to vector<2x128xf32>
    %22 = arith.addf %19, %21 : vector<2x128xf32>
    %c0_17 = arith.constant 0 : index
    %c0_18 = arith.constant 0 : index
    %c0_19 = arith.constant 0 : index
    %23 = vector.load %arg5[%c0_17, %c0_18, %c0_19] : memref<1x2x128xf32, #tpu.memory_space<vmem>>, vector<1x2x128xf32>
    %24 = vector.shape_cast %23 : vector<1x2x128xf32> to vector<2x128xf32>
    %25 = vector.shape_cast %22 : vector<2x128xf32> to vector<1x2x128xf32>
    tpu.vector_store %arg5[%c0_17, %c0_18, %c0_19], %25 {strides = array<i32>} : memref<1x2x128xf32, #tpu.memory_space<vmem>>, vector<1x2x128xf32>,
    return
  }
  func.func @transform_0(%arg0: i32, %arg1: i32) -> (i32, i32, i32) {
    %c1_i32 = arith.constant 1 : i32
    %0 = arith.muli %arg0, %c1_i32 : i32
    %1 = arith.addi %0, %arg1 : i32
    %c0_i32 = arith.constant 0 : i32
    %c0_i32_0 = arith.constant 0 : i32
    %c0_i32_1 = arith.constant 0 : i32
    return %c0_i32, %1, %c0_i32_0 : i32, i32, i32
  }
  func.func @transform_1(%arg0: i32, %arg1: i32) -> (i32, i32, i32) {
    %c1_i32 = arith.constant 1 : i32
    %0 = arith.muli %arg0, %c1_i32 : i32
    %1 = arith.addi %0, %arg1 : i32
    %c0_i32 = arith.constant 0 : i32
    %c0_i32_0 = arith.constant 0 : i32
    %c0_i32_1 = arith.constant 0 : i32
    return %c0_i32, %1, %c0_i32_0 : i32, i32, i32
  }
  func.func @transform_2(%arg0: i32, %arg1: i32) -> (i32, i32, i32) {
    %c0_i32 = arith.constant 0 : i32
    %c0_i32_0 = arith.constant 0 : i32
    %c0_i32_1 = arith.constant 0 : i32
    return %arg0, %c0_i32, %c0_i32_0 : i32, i32, i32
  }
  func.func @transform_3(%arg0: i32, %arg1: i32) -> (i32, i32, i32) {
    %c0_i32 = arith.constant 0 : i32
    %c0_i32_0 = arith.constant 0 : i32
    %c0_i32_1 = arith.constant 0 : i32
    return %arg0, %c0_i32, %c0_i32_0 : i32, i32, i32
  }
}

</mosaic_0001>

<llo_original>
// kernel: tpu_custom_call.1
$region0: #{tpu_custom_call.1}
  #allocation0 [shape = 'u32[]', space=smem, size = 0x4, offset = 0x4, fixed_abs, tag = 'smem constant byte address 0x4 - core index']
  #allocation1 [shape = 'u32[72,128]{1,0:T(1,128)}', space=vmem, size = 0x9000, scoped, tag = 'internal scratch']
  %s0 = inlined_call_operand.hbm [shape: f32[2,8,128], index: 0, kind: input, shape index: {}]
  %s1 = inlined_call_operand.hbm [shape: f32[2,8,128], index: 1, kind: input, shape index: {}]
  %s2 = inlined_call_operand.hbm [shape: f32[1,2,128], index: 2, kind: output, shape index: {0}]
  %s3 = inlined_call_operand.hbm [shape: f32[1,2,128], index: 3, kind: output, shape index: {1}]
  %4 = xla_tuple %s2, %s3
  %s5 = sld [smem:[#allocation0]]
  $region38: #{tpu_custom_call.1} parent=0
    _
  %s7 = ssub.s32 1, %s5
  %s8 = scalar_select 0, %s7, %s5
  $region1: #{tpu_custom_call.1} parent=0
    #allocation2 [shape = 'u8[8192]{0}', space=vmem, size = 0x2000, scoped, tag = 'input window, operand 0, single buffered']
    #allocation3 [shape = 's32[1]{0}', space=sflag, size = 0x4, scoped, tag = 'scoped memory for tpu_custom_call.1']
    #allocation4 [shape = 's32[1]{0}', space=sflag, size = 0x4, scoped, tag = 'scoped memory for tpu_custom_call.1']
    #allocation5 [shape = 'u8[8192]{0}', space=vmem, size = 0x2000, scoped, tag = 'input window, operand 1, single buffered']
    #allocation6 [shape = 's32[1]{0}', space=sflag, size = 0x4, scoped, tag = 'scoped memory for tpu_custom_call.1']
    #allocation7 [shape = 'u8[1024]{0}', space=vmem, size = 0x400, scoped, tag = 'output window, operand 0, single buffered']
    #allocation8 [shape = 'u8[1024]{0}', space=vmem, size = 0x400, scoped, tag = 'output window, operand 1, single buffered']
    #allocation9 [shape = 's32[1]{0}', space=sflag, size = 0x4, scoped, tag = 'scoped memory for tpu_custom_call.1']
    %9 = vsyncpa [#allocation3], 0
    %10 = vsyncpa [#allocation6], 0
    %11 = vsyncpa [#allocation4], 0
    %12 = vsyncpa [#allocation9], 0
    // Predicated region
    $region2: #{tpu_custom_call.1} parent=1 // pred_check
      _
    $region3: #{tpu_custom_call.1} parent=1 // pred_check_branch
      %14 = sbr.rel (0) target = $region5
    $region4: #{tpu_custom_call.1} parent=1 // pred_region
      %s15 = sadd.s32 0, 0
      %17 = vsyncadd [#allocation3], 0
      %s18 = smul.addr %s15, 8
      %s19 = scalar_lea.hbm %s0, %s18
      %s20 = sshll.u32 %s19, 4
      %s21 = int_to_ptr.hbm [resolvable:$true] %s20
      %s22 = sshll.u32 [#allocation2], 4
      %s23 = int_to_ptr.vmem [resolvable:$true] %s22
      %28 = dma.hbm_to_vmem [thread:$0]  %s21, 256, %s23, [#allocation3], 128, 128, 8
    $region5: #{tpu_custom_call.1} parent=1 // pred_fallthru
      _
    // Predicated region
    $region6: #{tpu_custom_call.1} parent=1 // pred_check
      _
    $region7: #{tpu_custom_call.1} parent=1 // pred_check_branch
      %30 = sbr.rel (0) target = $region9
    $region8: #{tpu_custom_call.1} parent=1 // pred_region
      %s31 = sadd.s32 0, 0
      %33 = vsyncadd [#allocation6], 0
      %s34 = smul.addr %s31, 8
      %s35 = scalar_lea.hbm %s1, %s34
      %s36 = sshll.u32 %s35, 4
      %s37 = int_to_ptr.hbm [resolvable:$true] %s36
      %s38 = sshll.u32 [#allocation5], 4
      %s39 = int_to_ptr.vmem [resolvable:$true] %s38
      %44 = dma.hbm_to_vmem [thread:$0]  %s37, 256, %s39, [#allocation6], 128, 128, 8
    $region9: #{tpu_custom_call.1} parent=1 // pred_fallthru
      _
    // Predicated region
    $region10: #{tpu_custom_call.1} parent=1 // pred_check
      _
    $region11: #{tpu_custom_call.1} parent=1 // pred_check_branch
      %46 = sbr.rel (0) target = $region13
    $region12: #{tpu_custom_call.1} parent=1 // pred_region
      %48 = dma.done [#allocation3], 256
    $region13: #{tpu_custom_call.1} parent=1 // pred_fallthru
      _
    // Predicated region
    $region14: #{tpu_custom_call.1} parent=1 // pred_check
      _
    $region15: #{tpu_custom_call.1} parent=1 // pred_check_branch
      %50 = sbr.rel (0) target = $region17
    $region16: #{tpu_custom_call.1} parent=1 // pred_region
      %52 = dma.done [#allocation6], 256
    $region17: #{tpu_custom_call.1} parent=1 // pred_fallthru
      _
    %s53 = sadd.s32 0, 0
    %s54 = sadd.s32 0, 0
    %p55 = scmp.eq.s32.totalorder 0, 0
    // Predicated region
    $region18: #{tpu_custom_call.1} parent=1 // pred_check
      %p56 = pneg %p55
    $region19: #{tpu_custom_call.1} parent=1 // pred_check_branch
      %58 = sbr.rel (%p56) target = $region21
    $region20: #{tpu_custom_call.1} parent=1 // pred_region
      %59 = vst [vmem:[#allocation7] sm:$0x3] 0.0
      %60 = vst [vmem:[#allocation8] sm:$0x3] 0.0
    $region21: #{tpu_custom_call.1} parent=1 // pred_fallthru
      _
    %v61 = vld [vmem:[#allocation2] sm:$0xff]
    %v62 = vld [vmem:[#allocation2 + $0x8] sm:$0xff]
    %v63 = vld [vmem:[#allocation5] sm:$0xff]
    %v64 = vld [vmem:[#allocation5 + $0x8] sm:$0xff]
    %v65 = vxor.u32 %v61, 2147483648
    %v66 = vxor.u32 %v62, 2147483648
    %v67 = vmul.f32 %v65, 1.442695
    %v68 = vpow.pop %v67
    %v69 = vmul.f32 %v66, 1.442695
    %v70 = vpow.pop %v69
    %v71 = vadd.f32 %v68, 1.0
    %v72 = vadd.f32 %v70, 1.0
    %v73 = vrcp.pop %v71
    %v74 = vmul.f32 %v71, %v73
    %v75 = vsub.f32 1.0, %v74
    %v76 = vmul.f32 %v73, %v75
    %v77 = vadd.f32 %v73, %v76
    %vm78 = vweird.f32 %v71
    %vm79 = vweird.f32 %v73
    %vm80 = vmor %vm78, %vm79
    %v81 = vsel %vm80, %v73, %v77
    %v82 = vand.u32 2147483647, %v71
    %vm83 = vcmp.eq.f32.partialorder %v82, 8.507059e+37
    %v84 = vand.u32 %v71, 2147483648
    %v85 = vor.u32 1.1754944e-38, %v84
    %v86 = vsel %vm83, %v85, %v81
    %v87 = vmul.f32 1.0, %v86
    %v88 = vrcp.pop %v72
    %v89 = vmul.f32 %v72, %v88
    %v90 = vsub.f32 1.0, %v89
    %v91 = vmul.f32 %v88, %v90
    %v92 = vadd.f32 %v88, %v91
    %vm93 = vweird.f32 %v72
    %vm94 = vweird.f32 %v88
    %vm95 = vmor %vm93, %vm94
    %v96 = vsel %vm95, %v88, %v92
    %v97 = vand.u32 2147483647, %v72
    %vm98 = vcmp.eq.f32.partialorder %v97, 8.507059e+37
    %v99 = vand.u32 %v72, 2147483648
    %v100 = vor.u32 1.1754944e-38, %v99
    %v101 = vsel %vm98, %v100, %v96
    %v102 = vmul.f32 1.0, %v101
    %v103 = vld [vmem:[#allocation7] sm:$0x3]
    %v104 = vmul.f32 %v87, %v63
    %v105 = vmul.f32 %v102, %v64
    %v106 = vrot.slane %v104, 4
    %v107 = vadd.f32 %v104, %v106
    %v108 = vrot.slane %v107, 2
    %v109 = vadd.f32 %v107, %v108
    %v110 = vrot.slane %v109, 1
    %v111 = vadd.f32 %v109, %v110
    %v112 = vrot.slane %v105, 4
    %v113 = vadd.f32 %v105, %v112
    %v114 = vrot.slane %v113, 2
    %v115 = vadd.f32 %v113, %v114
    %v116 = vrot.slane %v115, 1
    %v117 = vadd.f32 %v115, %v116
    %vm120 = vcmask 1041409
    %v121 = vsel %vm120, %v117, %v111
    %v123 = vadd.f32 %v103, %v121
    %124 = vst [vmem:[#allocation7] sm:$0x3] %v123
    %v125 = vld [vmem:[#allocation8] sm:$0x3]
    %v126 = vadd.f32 %v87, %v63
    %v127 = vadd.f32 %v102, %v64
    %v128 = vrot.slane %v126, 4
    %v129 = vadd.f32 %v126, %v128
    %v130 = vrot.slane %v129, 2
    %v131 = vadd.f32 %v129, %v130
    %v132 = vrot.slane %v131, 1
    %v133 = vadd.f32 %v131, %v132
    %v134 = vrot.slane %v127, 4
    %v135 = vadd.f32 %v127, %v134
    %v136 = vrot.slane %v135, 2
    %v137 = vadd.f32 %v135, %v136
    %v138 = vrot.slane %v137, 1
    %v139 = vadd.f32 %v137, %v138
    %v142 = vsel %vm120, %v139, %v133
    %v144 = vadd.f32 %v125, %v142
    %145 = vst [vmem:[#allocation8] sm:$0x3] %v144
    // Predicated region
    $region22: #{tpu_custom_call.1} parent=1 // pred_check
      _
    $region23: #{tpu_custom_call.1} parent=1 // pred_check_branch
      %147 = sbr.rel (0) target = $region25
    $region24: #{tpu_custom_call.1} parent=1 // pred_region
      %149 = vsyncadd [#allocation4], 0
      %s151 = sshll.u32 [#allocation7], 4
      %s152 = int_to_ptr.vmem [resolvable:$true] %s151
      %s153 = sshll.u32 %s2, 4
      %s154 = int_to_ptr.hbm [resolvable:$true] %s153
      %156 = dma.vmem_to_hbm [thread:$0]  %s152, 32, %s154, [#allocation4]
    $region25: #{tpu_custom_call.1} parent=1 // pred_fallthru
      _
    // Predicated region
    $region26: #{tpu_custom_call.1} parent=1 // pred_check
      _
    $region27: #{tpu_custom_call.1} parent=1 // pred_check_branch
      %158 = sbr.rel (0) target = $region29
    $region28: #{tpu_custom_call.1} parent=1 // pred_region
      %160 = vsyncadd [#allocation9], 0
      %s162 = sshll.u32 [#allocation8], 4
      %s163 = int_to_ptr.vmem [resolvable:$true] %s162
      %s164 = sshll.u32 %s3, 4
      %s165 = int_to_ptr.hbm [resolvable:$true] %s164
      %167 = dma.vmem_to_hbm [thread:$0]  %s163, 32, %s165, [#allocation9]
    $region29: #{tpu_custom_call.1} parent=1 // pred_fallthru
      _
    // Predicated region
    $region30: #{tpu_custom_call.1} parent=1 // pred_check
      _
    $region31: #{tpu_custom_call.1} parent=1 // pred_check_branch
      %169 = sbr.rel (0) target = $region33
    $region32: #{tpu_custom_call.1} parent=1 // pred_region
      %171 = dma.done [#allocation4], 32
    $region33: #{tpu_custom_call.1} parent=1 // pred_fallthru
      _
    // Predicated region
    $region34: #{tpu_custom_call.1} parent=1 // pred_check
      _
    $region35: #{tpu_custom_call.1} parent=1 // pred_check_branch
      %173 = sbr.rel (0) target = $region37
    $region36: #{tpu_custom_call.1} parent=1 // pred_region
      %175 = dma.done [#allocation9], 32
    $region37: #{tpu_custom_call.1} parent=1 // pred_fallthru
      _
    %176 = vsyncpa [#allocation3], 1
    %177 = vsyncpa [#allocation6], 1
    %178 = vsyncpa [#allocation4], 1
    %179 = vsyncpa [#allocation9], 1

</llo_original>
